<compile_context>
chip_gen: v7x
topology: tpu7x:2x2x1
jax: 0.10.0
libtpu: 0.0.40
codegen_flags: <defaults>
</compile_context>

<pallas_src>
import functools

import jax
import jax.numpy as jnp
from jax import lax
from jax.experimental import pallas as pl
from jax.experimental.pallas import tpu as pltpu


def _round_up(a, b):
    return ((a + b - 1) // b) * b


def _vmem_capacity_bytes():
    """Physical VMEM per core (128 MiB v5e/v6e, 64 MiB v7x); safe fallback."""
    try:
        return int(pltpu.get_tpu_info().vmem_capacity_bytes)
    except Exception:
        return 128 * 1024 * 1024


def _mlp_fan_kernel(x_ref,
                    w01_ref, b01_ref,     # fused MLPlist[0] @ MLPlist[1]
                    wf1_ref, bf1_ref,     # Feedforward_1
                    wf2_ref, bf2_ref,     # Feedforward_2
                    gamma_ref, beta_ref,  # layernorm used in forward
                    o_ref,
                    *, eps: float, compute_dtype):
    # bf16 LHS/RHS for the MXU, f32 accumulation.
    x = x_ref[...].astype(compute_dtype)

    # Fused MLPlist: one MXU matmul (W01 precomputed on host), f32 accumulate.
    h = jnp.dot(x, w01_ref[...], preferred_element_type=jnp.float32) + b01_ref[...]

    # Feedforward branch: FF2(relu(FF1(h)))
    ff = (jnp.dot(h.astype(compute_dtype), wf1_ref[...],
                  preferred_element_type=jnp.float32) + bf1_ref[...])
    ff = jnp.maximum(ff, 0.0)
    ff = (jnp.dot(ff.astype(compute_dtype), wf2_ref[...],
                  preferred_element_type=jnp.float32) + bf2_ref[...])

    # Residual + LayerNorm over the embedding dim, in f32.
    # TODO(synk): optionally split the tile into 2 row sub-chunks with
    # lax.fori_loop(unroll=True) so this LN epilogue overlaps the next
    # sub-chunk's matmuls (few-% win in the MXU-bound large-D regime).
    y = ff + h
    mean = jnp.mean(y, axis=-1, keepdims=True)
    centered = y - mean
    var = jnp.mean(centered * centered, axis=-1, keepdims=True)
    inv = lax.rsqrt(var + eps)                      # EUP slot
    out = centered * inv * gamma_ref[...] + beta_ref[...]

    o_ref[...] = out.astype(o_ref.dtype)


def _pick_tiling(n_rows, tile_m, row_align):
    """Grid first, then rebalance the row tile across the grid steps."""
    tile_m = max(row_align, _round_up(tile_m, row_align))
    grid = pl.cdiv(n_rows, tile_m)
    if grid > 1 and grid % 2 == 1:
        grid += 1                 # even split keeps both v7x TCs busy
    tile = _round_up(pl.cdiv(n_rows, grid), row_align)
    grid = pl.cdiv(n_rows, tile)  # tile rounding may have dropped a step
    return tile, grid


def mlp_fan_block(x, params, *, eps=1e-5, tile_m=None,
                  compute_dtype=jnp.bfloat16, io_dtype=None,
                  single_buffer_weights=None):
    """x: [batch, seq, D] or [N, D]. Returns same shape; dtype = io_dtype or x.dtype."""
    orig_shape = x.shape
    D = orig_shape[-1]
    x2 = x.reshape(-1, D)
    if io_dtype is not None:
        # bf16 I/O halves row-tile HBM traffic; worthwhile when the caller
        # already keeps activations in that dtype.
        x2 = x2.astype(io_dtype)
    out_dtype = x2.dtype
    N = x2.shape[0]

    f32 = jnp.float32
    w_item = jnp.dtype(compute_dtype).itemsize
    io_item = jnp.dtype(out_dtype).itemsize
    vmem_cap = _vmem_capacity_bytes()

    # Generation-aware defaults.
    if tile_m is None:
        tile_m = 512
        if vmem_cap <= 80 * 1024 * 1024 and D >= 2048:
            tile_m = 256          # v7x-class: 64 MiB VMEM + big resident weights
    if single_buffer_weights is None:
        # Double-buffered weights cost 6*D^2*w_item bytes; only request single
        # buffering where that threatens VMEM, and fail loudly if the installed
        # Pallas rejects it instead of silently keeping 2 buffers.
        single_buffer_weights = (6 * D * D * w_item) > (vmem_cap // 4)

    row_align = 16 if jnp.dtype(compute_dtype) == jnp.dtype(jnp.bfloat16) else 8
    tile, grid = _pick_tiling(N, tile_m, row_align)

    (w0, b0, w1, b1, wf1, bf1, wf2, bf2, gamma, beta) = params
    # Fuse the two activation-free MLPlist linears on the host (f32), then cast
    # the matmul weights to the compute dtype. Biases / LN params stay f32.
    w01 = (w0.astype(f32) @ w1.astype(f32)).astype(compute_dtype)
    b01 = (b0.astype(f32) @ w1.astype(f32) + b1.astype(f32))
    wf1_c, wf2_c = wf1.astype(compute_dtype), wf2.astype(compute_dtype)
    bf1_f, bf2_f = bf1.astype(f32), bf2.astype(f32)
    gamma_f, beta_f = gamma.astype(f32), beta.astype(f32)

    # VMEM estimate: resident weights (1 or 2 buffers), double-buffered row
    # tiles, f32 intermediates; limit is ~85% of physical VMEM so larger
    # tiles / D are not blocked by an artificial clamp on v5e/v6e.
    weight_bufs = 1 if single_buffer_weights else 2
    est = (3 * D * D * w_item * weight_bufs        # weight matrices
           + 6 * D * 4 * 2                         # bias / LN vectors
           + 2 * tile * D * io_item * 2            # x + out tiles, 2 bufs each
           + 5 * tile * D * 4)                     # f32 intermediates
    vmem_limit = int(min(max(int(1.5 * est), 32 * 1024 * 1024),
                         int(0.85 * vmem_cap)))

    rows = tile * grid                             # includes small ragged tail
    cost = pl.CostEstimate(
        flops=2 * rows * D * D * 3 + 10 * rows * D,
        transcendentals=rows,                      # one rsqrt per row
        bytes_accessed=(N * D * io_item * 2        # x in + y out
                        + 3 * D * D * w_item + 6 * D * 4),
    )

    kernel = functools.partial(_mlp_fan_kernel, eps=eps,
                               compute_dtype=compute_dtype)

    # TODO(synk): for D >~ 2048 on v7x (64 MiB VMEM) the three resident DxD
    # matrices stop fitting; stream weight column blocks via a second
    # "arbitrary" grid axis (or pltpu.emit_pipeline) instead of full residency.
    if single_buffer_weights:
        # Constant index_map -> no revolving needed; single buffer saves VMEM.
        mat_spec = pl.BlockSpec((D, D), lambda i: (0, 0),
                                pipeline_mode=pl.Buffered(1))
    else:
        mat_spec = pl.BlockSpec((D, D), lambda i: (0, 0))
    vec_spec = pl.BlockSpec((1, D), lambda i: (0, 0))
    row_spec = pl.BlockSpec((tile, D), lambda i: (i, 0))

    out = pl.pallas_call(
        kernel,
        out_shape=jax.ShapeDtypeStruct((N, D), out_dtype),
        grid_spec=pltpu.PrefetchScalarGridSpec(
            num_scalar_prefetch=0,
            grid=(grid,),
            in_specs=[
                row_spec,                 # x tile (ragged tail handled by Pallas)
                mat_spec, vec_spec,       # fused MLPlist
                mat_spec, vec_spec,       # Feedforward_1
                mat_spec, vec_spec,       # Feedforward_2
                vec_spec, vec_spec,       # layernorm gamma / beta
            ],
            out_specs=row_spec,
        ),
        compiler_params=pltpu.CompilerParams(
            dimension_semantics=("parallel",),
            vmem_limit_bytes=vmem_limit,
        ),
        cost_estimate=cost,
    )(x2, w01, b01, wf1_c, bf1_f, wf2_c, bf2_f, gamma_f, beta_f)

    return out.reshape(orig_shape)


def init_params(key, D, dtype=jnp.float32):
    """Deterministic PyTorch-like init: U(-1/sqrt(D), 1/sqrt(D)) for linears."""
    keys = jax.random.split(key, 8)
    bound = 1.0 / (D ** 0.5)

    def lin(kw, kb):
        # Stored as [D_in, D_out] (transpose of torch's [out, in]).
        w = jax.random.uniform(kw, (D, D), dtype, minval=-bound, maxval=bound)
        b = jax.random.uniform(kb, (1, D), dtype, minval=-bound, maxval=bound)
        return w, b

    w0, b0 = lin(keys[0], keys[1])      # MLPlist[0]
    w1, b1 = lin(keys[2], keys[3])      # MLPlist[1]
    wf1, bf1 = lin(keys[4], keys[5])    # Feedforward_1
    wf2, bf2 = lin(keys[6], keys[7])    # Feedforward_2
    gamma = jnp.ones((1, D), dtype)     # layernorm weight
    beta = jnp.zeros((1, D), dtype)     # layernorm bias
    return (w0, b0, w1, b1, wf1, bf1, wf2, bf2, gamma, beta)


def reference(x, params, eps=1e-5):
    """Pure-JAX f32 reference mirroring the PyTorch forward."""
    (w0, b0, w1, b1, wf1, bf1, wf2, bf2, gamma, beta) = params
    h = x @ w0 + b0
    h = h @ w1 + b1
    ff = jnp.maximum(h @ wf1 + bf1, 0.0) @ wf2 + bf2
    y = ff + h
    mean = y.mean(-1, keepdims=True)
    var = ((y - mean) ** 2).mean(-1, keepdims=True)
    return (y - mean) / jnp.sqrt(var + eps) * gamma + beta


if __name__ == "__main__":
    batch, seq, embedding_dim = 2, 8, 128
    key = jax.random.PRNGKey(0)
    kx, kp = jax.random.split(key)

    x = jax.random.normal(kx, (batch, seq, embedding_dim), jnp.float32)
    params = init_params(kp, embedding_dim)

    out = jax.block_until_ready(mlp_fan_block(x, params))
    ref = reference(x, params)

    assert out.shape == x.shape
    # bf16 matmuls (f32 accumulation) + host-fused W0@W1 vs. a pure-f32
    # reference -> looser tolerance (LayerNorm renormalizes most of the drift).
    assert jnp.allclose(out, ref, atol=5e-2, rtol=5e-2), "mismatch vs reference"

    print("KERNEL_OK")
</pallas_src>

<mosaic_0001>
module attributes {stable_mosaic.version = 11 : i64} {
  func.func @_mlp_fan_kernel(%arg0: i32, %arg1: memref<16x128xf32, #tpu.memory_space<vmem>>, %arg2: memref<128x128xbf16, #tpu.memory_space<vmem>>, %arg3: memref<1x128xf32, #tpu.memory_space<vmem>>, %arg4: memref<128x128xbf16, #tpu.memory_space<vmem>>, %arg5: memref<1x128xf32, #tpu.memory_space<vmem>>, %arg6: memref<128x128xbf16, #tpu.memory_space<vmem>>, %arg7: memref<1x128xf32, #tpu.memory_space<vmem>>, %arg8: memref<1x128xf32, #tpu.memory_space<vmem>>, %arg9: memref<1x128xf32, #tpu.memory_space<vmem>>, %arg10: memref<16x128xf32, #tpu.memory_space<vmem>>) attributes {dimension_semantics = [#tpu.dimension_semantics<parallel>], iteration_bounds = array<i64: 1>, scalar_prefetch = 0 : i64, scratch_operands = 0 : i64, tpu.core_type = #tpu.core_type<tc>, window_params = [{transform_indices = @transform_0, window_bounds = array<i64: 16, 128>}, {pipeline_mode = #tpu.pipeline_mode<synchronous>, transform_indices = @transform_1, window_bounds = array<i64: 128, 128>}, {pipeline_mode = #tpu.pipeline_mode<synchronous>, transform_indices = @transform_2, window_bounds = array<i64: 1, 128>}, {pipeline_mode = #tpu.pipeline_mode<synchronous>, transform_indices = @transform_3, window_bounds = array<i64: 128, 128>}, {pipeline_mode = #tpu.pipeline_mode<synchronous>, transform_indices = @transform_4, window_bounds = array<i64: 1, 128>}, {pipeline_mode = #tpu.pipeline_mode<synchronous>, transform_indices = @transform_5, window_bounds = array<i64: 128, 128>}, {pipeline_mode = #tpu.pipeline_mode<synchronous>, transform_indices = @transform_6, window_bounds = array<i64: 1, 128>}, {pipeline_mode = #tpu.pipeline_mode<synchronous>, transform_indices = @transform_7, window_bounds = array<i64: 1, 128>}, {pipeline_mode = #tpu.pipeline_mode<synchronous>, transform_indices = @transform_8, window_bounds = array<i64: 1, 128>}, {transform_indices = @transform_9, window_bounds = array<i64: 16, 128>}]} {
    %c0 = arith.constant 0 : index
    %c0_0 = arith.constant 0 : index
    %0 = vector.load %arg1[%c0, %c0_0] : memref<16x128xf32, #tpu.memory_space<vmem>>, vector<16x128xf32>
    %1 = arith.truncf %0 : vector<16x128xf32> to vector<16x128xbf16>
    %c0_1 = arith.constant 0 : index
    %c0_2 = arith.constant 0 : index
    %2 = vector.load %arg2[%c0_1, %c0_2] : memref<128x128xbf16, #tpu.memory_space<vmem>>, vector<128x128xbf16>
    %cst = arith.constant dense<0.000000e+00> : vector<16x128xf32>
    %3 = tpu.matmul %1, %2, %cst {dimension_numbers = #tpu.dot_dimension_numbers<[1], [0], [0], [1], [0, 0, 1, 1], [], []>} : vector<16x128xbf16>, vector<128x128xbf16>, vector<16x128xf32> -> vector<16x128xf32>
    %c0_3 = arith.constant 0 : index
    %c0_4 = arith.constant 0 : index
    %4 = vector.load %arg3[%c0_3, %c0_4] : memref<1x128xf32, #tpu.memory_space<vmem>>, vector<1x128xf32>
    %5 = vector.broadcast %4 : vector<1x128xf32> to vector<16x128xf32>
    %6 = arith.addf %3, %5 : vector<16x128xf32>
    %7 = arith.truncf %6 : vector<16x128xf32> to vector<16x128xbf16>
    %c0_5 = arith.constant 0 : index
    %c0_6 = arith.constant 0 : index
    %8 = vector.load %arg4[%c0_5, %c0_6] : memref<128x128xbf16, #tpu.memory_space<vmem>>, vector<128x128xbf16>
    %cst_7 = arith.constant dense<0.000000e+00> : vector<16x128xf32>
    %9 = tpu.matmul %7, %8, %cst_7 {dimension_numbers = #tpu.dot_dimension_numbers<[1], [0], [0], [1], [0, 0, 1, 1], [], []>} : vector<16x128xbf16>, vector<128x128xbf16>, vector<16x128xf32> -> vector<16x128xf32>
    %c0_8 = arith.constant 0 : index
    %c0_9 = arith.constant 0 : index
    %10 = vector.load %arg5[%c0_8, %c0_9] : memref<1x128xf32, #tpu.memory_space<vmem>>, vector<1x128xf32>
    %11 = vector.broadcast %10 : vector<1x128xf32> to vector<16x128xf32>
    %12 = arith.addf %9, %11 : vector<16x128xf32>
    %cst_10 = arith.constant 0.000000e+00 : f32
    %13 = vector.broadcast %cst_10 : f32 to vector<16x128xf32>
    %14 = arith.maximumf %12, %13 : vector<16x128xf32>
    %15 = arith.truncf %14 : vector<16x128xf32> to vector<16x128xbf16>
    %c0_11 = arith.constant 0 : index
    %c0_12 = arith.constant 0 : index
    %16 = vector.load %arg6[%c0_11, %c0_12] : memref<128x128xbf16, #tpu.memory_space<vmem>>, vector<128x128xbf16>
    %cst_13 = arith.constant dense<0.000000e+00> : vector<16x128xf32>
    %17 = tpu.matmul %15, %16, %cst_13 {dimension_numbers = #tpu.dot_dimension_numbers<[1], [0], [0], [1], [0, 0, 1, 1], [], []>} : vector<16x128xbf16>, vector<128x128xbf16>, vector<16x128xf32> -> vector<16x128xf32>
    %c0_14 = arith.constant 0 : index
    %c0_15 = arith.constant 0 : index
    %18 = vector.load %arg7[%c0_14, %c0_15] : memref<1x128xf32, #tpu.memory_space<vmem>>, vector<1x128xf32>
    %19 = vector.broadcast %18 : vector<1x128xf32> to vector<16x128xf32>
    %20 = arith.addf %17, %19 : vector<16x128xf32>
    %21 = arith.addf %20, %6 : vector<16x128xf32>
    %cst_16 = arith.constant dense<0.000000e+00> : vector<16xf32>
    %22 = vector.multi_reduction <add>, %21, %cst_16 [1] : vector<16x128xf32> to vector<16xf32>
    %23 = vector.shape_cast %22 : vector<16xf32> to vector<16x1xf32>
    %cst_17 = arith.constant 1.280000e+02 : f32
    %24 = vector.broadcast %cst_17 : f32 to vector<16x1xf32>
    %25 = arith.divf %23, %24 : vector<16x1xf32>
    %26 = vector.broadcast %25 : vector<16x1xf32> to vector<16x128xf32>
    %27 = arith.subf %21, %26 : vector<16x128xf32>
    %28 = arith.mulf %27, %27 : vector<16x128xf32>
    %cst_18 = arith.constant dense<0.000000e+00> : vector<16xf32>
    %29 = vector.multi_reduction <add>, %28, %cst_18 [1] : vector<16x128xf32> to vector<16xf32>
    %30 = vector.shape_cast %29 : vector<16xf32> to vector<16x1xf32>
    %cst_19 = arith.constant 1.280000e+02 : f32
    %31 = vector.broadcast %cst_19 : f32 to vector<16x1xf32>
    %32 = arith.divf %30, %31 : vector<16x1xf32>
    %cst_20 = arith.constant 9.99999974E-6 : f32
    %33 = vector.broadcast %cst_20 : f32 to vector<16x1xf32>
    %34 = arith.addf %32, %33 : vector<16x1xf32>
    %35 = math.rsqrt %34 : vector<16x1xf32>
    %36 = vector.broadcast %35 : vector<16x1xf32> to vector<16x128xf32>
    %37 = arith.mulf %27, %36 : vector<16x128xf32>
    %c0_21 = arith.constant 0 : index
    %c0_22 = arith.constant 0 : index
    %38 = vector.load %arg8[%c0_21, %c0_22] : memref<1x128xf32, #tpu.memory_space<vmem>>, vector<1x128xf32>
    %39 = vector.broadcast %38 : vector<1x128xf32> to vector<16x128xf32>
    %40 = arith.mulf %37, %39 : vector<16x128xf32>
    %c0_23 = arith.constant 0 : index
    %c0_24 = arith.constant 0 : index
    %41 = vector.load %arg9[%c0_23, %c0_24] : memref<1x128xf32, #tpu.memory_space<vmem>>, vector<1x128xf32>
    %42 = vector.broadcast %41 : vector<1x128xf32> to vector<16x128xf32>
    %43 = arith.addf %40, %42 : vector<16x128xf32>
    %c0_25 = arith.constant 0 : index
    %c0_26 = arith.constant 0 : index
    %44 = vector.load %arg10[%c0_25, %c0_26] : memref<16x128xf32, #tpu.memory_space<vmem>>, vector<16x128xf32>
    tpu.vector_store %arg10[%c0_25, %c0_26], %43 {strides = array<i32>} : memref<16x128xf32, #tpu.memory_space<vmem>>, vector<16x128xf32>,
    return
  }
  func.func @transform_0(%arg0: i32) -> (i32, i32) {
    %c0_i32 = arith.constant 0 : i32
    %c0_i32_0 = arith.constant 0 : i32
    return %arg0, %c0_i32 : i32, i32
  }
  func.func @transform_1(%arg0: i32) -> (i32, i32) {
    %c0_i32 = arith.constant 0 : i32
    %c0_i32_0 = arith.constant 0 : i32
    %c0_i32_1 = arith.constant 0 : i32
    return %c0_i32, %c0_i32_0 : i32, i32
  }
  func.func @transform_2(%arg0: i32) -> (i32, i32) {
    %c0_i32 = arith.constant 0 : i32
    %c0_i32_0 = arith.constant 0 : i32
    %c0_i32_1 = arith.constant 0 : i32
    return %c0_i32, %c0_i32_0 : i32, i32
  }
  func.func @transform_3(%arg0: i32) -> (i32, i32) {
    %c0_i32 = arith.constant 0 : i32
    %c0_i32_0 = arith.constant 0 : i32
    %c0_i32_1 = arith.constant 0 : i32
    return %c0_i32, %c0_i32_0 : i32, i32
  }
  func.func @transform_4(%arg0: i32) -> (i32, i32) {
    %c0_i32 = arith.constant 0 : i32
    %c0_i32_0 = arith.constant 0 : i32
    %c0_i32_1 = arith.constant 0 : i32
    return %c0_i32, %c0_i32_0 : i32, i32
  }
  func.func @transform_5(%arg0: i32) -> (i32, i32) {
    %c0_i32 = arith.constant 0 : i32
    %c0_i32_0 = arith.constant 0 : i32
    %c0_i32_1 = arith.constant 0 : i32
    return %c0_i32, %c0_i32_0 : i32, i32
  }
  func.func @transform_6(%arg0: i32) -> (i32, i32) {
    %c0_i32 = arith.constant 0 : i32
    %c0_i32_0 = arith.constant 0 : i32
    %c0_i32_1 = arith.constant 0 : i32
    return %c0_i32, %c0_i32_0 : i32, i32
  }
  func.func @transform_7(%arg0: i32) -> (i32, i32) {
    %c0_i32 = arith.constant 0 : i32
    %c0_i32_0 = arith.constant 0 : i32
    %c0_i32_1 = arith.constant 0 : i32
    return %c0_i32, %c0_i32_0 : i32, i32
  }
  func.func @transform_8(%arg0: i32) -> (i32, i32) {
    %c0_i32 = arith.constant 0 : i32
    %c0_i32_0 = arith.constant 0 : i32
    %c0_i32_1 = arith.constant 0 : i32
    return %c0_i32, %c0_i32_0 : i32, i32
  }
  func.func @transform_9(%arg0: i32) -> (i32, i32) {
    %c0_i32 = arith.constant 0 : i32
    %c0_i32_0 = arith.constant 0 : i32
    return %arg0, %c0_i32 : i32, i32
  }
}

</mosaic_0001>

<llo_original>
// kernel: tpu_custom_call.1
$region0: #{tpu_custom_call.1}
  #allocation0 [shape = 'u32[]', space=smem, size = 0x4, offset = 0x4, fixed_abs, tag = 'smem constant byte address 0x4 - core index']
  #allocation1 [shape = 'u32[144,128]{1,0:T(1,128)}', space=vmem, size = 0x12000, scoped, tag = 'internal scratch']
  %s0 = inlined_call_operand.hbm [shape: f32[16,128], index: 0, kind: input, shape index: {}]
  %s1 = inlined_call_operand.hbm [shape: bf16[128,128], index: 1, kind: input, shape index: {}]
  %s2 = inlined_call_operand.vmem [shape: f32[1,128], index: 2, kind: input, shape index: {}]
  %s3 = inlined_call_operand.hbm [shape: bf16[128,128], index: 3, kind: input, shape index: {}]
  %s4 = inlined_call_operand.vmem [shape: f32[1,128], index: 4, kind: input, shape index: {}]
  %s5 = inlined_call_operand.hbm [shape: bf16[128,128], index: 5, kind: input, shape index: {}]
  %s6 = inlined_call_operand.vmem [shape: f32[1,128], index: 6, kind: input, shape index: {}]
  %s7 = inlined_call_operand.vmem [shape: f32[1,128], index: 7, kind: input, shape index: {}]
  %s8 = inlined_call_operand.vmem [shape: f32[1,128], index: 8, kind: input, shape index: {}]
  %s9 = inlined_call_operand.hbm [shape: f32[16,128], index: 9, kind: output, shape index: {}]
  %s10 = sld [smem:[#allocation0]]
  $region62: #{tpu_custom_call.1} parent=0
    _
  %s12 = ssub.s32 1, %s10
  %s13 = scalar_select 0, %s12, %s10
  $region1: #{tpu_custom_call.1} parent=0
    #allocation2 [shape = 'u8[8192]{0}', space=vmem, size = 0x2000, scoped, tag = 'input window, operand 0, single buffered']
    #allocation3 [shape = 's32[1]{0}', space=sflag, size = 0x4, scoped, tag = 'scoped memory for tpu_custom_call.1']
    #allocation4 [shape = 's32[1]{0}', space=sflag, size = 0x4, scoped, tag = 'scoped memory for tpu_custom_call.1']
    #allocation5 [shape = 'u8[32768]{0}', space=vmem, size = 0x8000, scoped, tag = 'input window, operand 1, single buffered']
    #allocation6 [shape = 's32[1]{0}', space=sflag, size = 0x4, scoped, tag = 'scoped memory for tpu_custom_call.1']
    #allocation7 [shape = 'u8[32768]{0}', space=vmem, size = 0x8000, scoped, tag = 'input window, operand 3, single buffered']
    #allocation8 [shape = 'u8[32768]{0}', space=vmem, size = 0x8000, scoped, tag = 'input window, operand 5, single buffered']
    #allocation9 [shape = 's32[1]{0}', space=sflag, size = 0x4, scoped, tag = 'scoped memory for tpu_custom_call.1']
    #allocation10 [shape = 'u8[8192]{0}', space=vmem, size = 0x2000, scoped, tag = 'output window, operand 0, single buffered']
    %14 = vsyncpa [#allocation3], 0
    %15 = vsyncpa [#allocation6], 0
    %16 = vsyncpa [#allocation9], 0
    %17 = vsyncpa [#allocation4], 0
    // Predicated region
    $region2: #{tpu_custom_call.1} parent=1 // pred_check
      _
    $region3: #{tpu_custom_call.1} parent=1 // pred_check_branch
      %19 = sbr.rel (0) target = $region5
    $region4: #{tpu_custom_call.1} parent=1 // pred_region
      %s21 = ssub.s32 256, 256
      %22 = vsyncadd [#allocation3], %s21
      %s23 = sshll.u32 [#allocation2], 4
      %s24 = int_to_ptr.vmem [resolvable:$true] %s23
      %29 = dma.hbm_to_vmem [thread:$0]  %s0, 256, %s24, [#allocation3], 128, 128, 8
    $region5: #{tpu_custom_call.1} parent=1 // pred_fallthru
      _
    // Predicated region
    $region6: #{tpu_custom_call.1} parent=1 // pred_check
      _
    $region7: #{tpu_custom_call.1} parent=1 // pred_check_branch
      %31 = sbr.rel (0) target = $region9
    $region8: #{tpu_custom_call.1} parent=1 // pred_region
      %s33 = ssub.s32 1024, 1024
      %34 = vsyncadd [#allocation6], %s33
      %s35 = sshll.u32 [#allocation5], 4
      %s36 = int_to_ptr.vmem [resolvable:$true] %s35
      %41 = dma.hbm_to_vmem [thread:$0]  %s1, 1024, %s36, [#allocation6], 64, 64, 4
    $region9: #{tpu_custom_call.1} parent=1 // pred_fallthru
      _
    // Predicated region
    $region10: #{tpu_custom_call.1} parent=1 // pred_check
      _
    $region11: #{tpu_custom_call.1} parent=1 // pred_check_branch
      %43 = sbr.rel (0) target = $region13
    $region12: #{tpu_custom_call.1} parent=1 // pred_region
      _
    $region13: #{tpu_custom_call.1} parent=1 // pred_fallthru
      _
    // Predicated region
    $region14: #{tpu_custom_call.1} parent=1 // pred_check
      _
    $region15: #{tpu_custom_call.1} parent=1 // pred_check_branch
      %45 = sbr.rel (0) target = $region17
    $region16: #{tpu_custom_call.1} parent=1 // pred_region
      %s47 = ssub.s32 1024, 1024
      %48 = vsyncadd [#allocation6], %s47
      %s49 = sshll.u32 [#allocation7], 4
      %s50 = int_to_ptr.vmem [resolvable:$true] %s49
      %55 = dma.hbm_to_vmem [thread:$0]  %s3, 1024, %s50, [#allocation6], 64, 64, 4
    $region17: #{tpu_custom_call.1} parent=1 // pred_fallthru
      _
    // Predicated region
    $region18: #{tpu_custom_call.1} parent=1 // pred_check
      _
    $region19: #{tpu_custom_call.1} parent=1 // pred_check_branch
      %57 = sbr.rel (0) target = $region21
    $region20: #{tpu_custom_call.1} parent=1 // pred_region
      _
    $region21: #{tpu_custom_call.1} parent=1 // pred_fallthru
      _
    // Predicated region
    $region22: #{tpu_custom_call.1} parent=1 // pred_check
      _
    $region23: #{tpu_custom_call.1} parent=1 // pred_check_branch
      %59 = sbr.rel (0) target = $region25
    $region24: #{tpu_custom_call.1} parent=1 // pred_region
      %s61 = ssub.s32 1024, 1024
      %62 = vsyncadd [#allocation9], %s61
      %s63 = sshll.u32 [#allocation8], 4
      %s64 = int_to_ptr.vmem [resolvable:$true] %s63
      %69 = dma.hbm_to_vmem [thread:$0]  %s5, 1024, %s64, [#allocation9], 64, 64, 4
    $region25: #{tpu_custom_call.1} parent=1 // pred_fallthru
      _
    // Predicated region
    $region26: #{tpu_custom_call.1} parent=1 // pred_check
      _
    $region27: #{tpu_custom_call.1} parent=1 // pred_check_branch
      %71 = sbr.rel (0) target = $region29
    $region28: #{tpu_custom_call.1} parent=1 // pred_region
      _
    $region29: #{tpu_custom_call.1} parent=1 // pred_fallthru
      _
    // Predicated region
    $region30: #{tpu_custom_call.1} parent=1 // pred_check
      _
    $region31: #{tpu_custom_call.1} parent=1 // pred_check_branch
      %73 = sbr.rel (0) target = $region33
    $region32: #{tpu_custom_call.1} parent=1 // pred_region
      _
    $region33: #{tpu_custom_call.1} parent=1 // pred_fallthru
      _
    // Predicated region
    $region34: #{tpu_custom_call.1} parent=1 // pred_check
      _
    $region35: #{tpu_custom_call.1} parent=1 // pred_check_branch
      %75 = sbr.rel (0) target = $region37
    $region36: #{tpu_custom_call.1} parent=1 // pred_region
      _
    $region37: #{tpu_custom_call.1} parent=1 // pred_fallthru
      _
    // Predicated region
    $region38: #{tpu_custom_call.1} parent=1 // pred_check
      _
    $region39: #{tpu_custom_call.1} parent=1 // pred_check_branch
      %77 = sbr.rel (0) target = $region41
    $region40: #{tpu_custom_call.1} parent=1 // pred_region
      %78 = dma.done [#allocation3], 256
    $region41: #{tpu_custom_call.1} parent=1 // pred_fallthru
      _
    // Predicated region
    $region42: #{tpu_custom_call.1} parent=1 // pred_check
      _
    $region43: #{tpu_custom_call.1} parent=1 // pred_check_branch
      %80 = sbr.rel (0) target = $region45
    $region44: #{tpu_custom_call.1} parent=1 // pred_region
      %81 = dma.done [#allocation6], 1024
    $region45: #{tpu_custom_call.1} parent=1 // pred_fallthru
      _
    // Predicated region
    $region46: #{tpu_custom_call.1} parent=1 // pred_check
      _
    $region47: #{tpu_custom_call.1} parent=1 // pred_check_branch
      %83 = sbr.rel (0) target = $region49
    $region48: #{tpu_custom_call.1} parent=1 // pred_region
      %84 = dma.done [#allocation6], 1024
    $region49: #{tpu_custom_call.1} parent=1 // pred_fallthru
      _
    // Predicated region
    $region50: #{tpu_custom_call.1} parent=1 // pred_check
      _
    $region51: #{tpu_custom_call.1} parent=1 // pred_check_branch
      %86 = sbr.rel (0) target = $region53
    $region52: #{tpu_custom_call.1} parent=1 // pred_region
      %87 = dma.done [#allocation9], 1024
    $region53: #{tpu_custom_call.1} parent=1 // pred_fallthru
      _
    %v89 = vld [vmem:[#allocation2] sm:$0xff]
    %v90 = vld [vmem:[#allocation2 + $0x8] sm:$0xff]
    %v91 = vpack.c.bf16 %v90, %v89
    %v92 = vld [vmem:[#allocation5] sm:$0xf]
    %v93 = vld [vmem:[#allocation5 + $0x4] sm:$0xf]
    %v94 = vld [vmem:[#allocation5 + $0x8] sm:$0xf]
    %v95 = vld [vmem:[#allocation5 + $0xc] sm:$0xf]
    %v96 = vld [vmem:[#allocation5 + $0x10] sm:$0xf]
    %v97 = vld [vmem:[#allocation5 + $0x14] sm:$0xf]
    %v98 = vld [vmem:[#allocation5 + $0x18] sm:$0xf]
    %v99 = vld [vmem:[#allocation5 + $0x1c] sm:$0xf]
    %v100 = vld [vmem:[#allocation5 + $0x20] sm:$0xf]
    %v101 = vld [vmem:[#allocation5 + $0x24] sm:$0xf]
    %v102 = vld [vmem:[#allocation5 + $0x28] sm:$0xf]
    %v103 = vld [vmem:[#allocation5 + $0x2c] sm:$0xf]
    %v104 = vld [vmem:[#allocation5 + $0x30] sm:$0xf]
    %v105 = vld [vmem:[#allocation5 + $0x34] sm:$0xf]
    %v106 = vld [vmem:[#allocation5 + $0x38] sm:$0xf]
    %v107 = vld [vmem:[#allocation5 + $0x3c] sm:$0xf]
    %v108 = vld [vmem:[%s2] sm:$0x1]
    %v110 = vlaneseq
    %v111 = vshrl.u32 %v110, 7
    %v112 = vsub.s32 0, %v111
    %v113 = vrot.slane %v108, %v112
    %v131 = vunpack.c.l.b16 %v92
    %v132 = vunpack.c.l.b16 %v93
    %v133 = vunpack.c.l.b16 %v94
    %v134 = vunpack.c.l.b16 %v95
    %v135 = vunpack.c.l.b16 %v96
    %v136 = vunpack.c.l.b16 %v97
    %v137 = vunpack.c.l.b16 %v98
    %v138 = vunpack.c.l.b16 %v99
    %v139 = vunpack.c.l.b16 %v100
    %v140 = vunpack.c.l.b16 %v101
    %v141 = vunpack.c.l.b16 %v102
    %v142 = vunpack.c.l.b16 %v103
    %v143 = vunpack.c.l.b16 %v104
    %v144 = vunpack.c.l.b16 %v105
    %v145 = vunpack.c.l.b16 %v106
    %v146 = vunpack.c.l.b16 %v107
    %v147 = vpack.c.b16 %v132, %v131
    %v148 = vpack.c.b16 %v134, %v133
    %v149 = vpack.c.b16 %v136, %v135
    %v150 = vpack.c.b16 %v138, %v137
    %v151 = vpack.c.b16 %v140, %v139
    %v152 = vpack.c.b16 %v142, %v141
    %v153 = vpack.c.b16 %v144, %v143
    %v154 = vpack.c.b16 %v146, %v145
    %163 = vmatprep.subr.bf16.mxu0 0
    %164 = vmatpush1.bf16.msra.mxu0 %v147
    %165 = vmatprep.subr.bf16.mxu0 0
    %166 = vmatpush1.bf16.msra.mxu0 %v148
    %167 = vmatprep.subr.bf16.mxu0 0
    %168 = vmatpush1.bf16.msra.mxu0 %v149
    %169 = vmatprep.subr.bf16.mxu0 0
    %170 = vmatpush1.bf16.msra.mxu0 %v150
    %171 = vmatprep.subr.bf16.mxu0 0
    %172 = vmatpush1.bf16.msra.mxu0 %v151
    %173 = vmatprep.subr.bf16.mxu0 0
    %174 = vmatpush1.bf16.msra.mxu0 %v152
    %175 = vmatprep.subr.bf16.mxu0 0
    %176 = vmatpush1.bf16.msra.mxu0 %v153
    %177 = vmatprep.subr.bf16.mxu0 0
    %178 = vmatpush1.bf16.msra.mxu0 %v154
    %179 = vmatprep.subr.bf16.mxu0 0
    %180 = vmatpush1.bf16.msra.mxu0 0
    %181 = vmatprep.subr.bf16.mxu0 0
    %182 = vmatpush1.bf16.msra.mxu0 0
    %183 = vmatprep.subr.bf16.mxu0 0
    %184 = vmatpush1.bf16.msra.mxu0 0
    %185 = vmatprep.subr.bf16.mxu0 0
    %186 = vmatpush1.bf16.msra.mxu0 0
    %187 = vmatprep.subr.bf16.mxu0 0
    %188 = vmatpush1.bf16.msra.mxu0 0
    %189 = vmatprep.subr.bf16.mxu0 0
    %190 = vmatpush1.bf16.msra.mxu0 0
    %191 = vmatprep.subr.bf16.mxu0 0
    %192 = vmatpush1.bf16.msra.mxu0 0
    %193 = vmatprep.subr.bf16.mxu0 0
    %194 = vmatpush1.bf16.msra.mxu0 0
    %195 = vmatprep.mubr.bf16.mxu0 0
    %196 = vmatmul.mubr.bf16.gmra.mrb[0].mxu0 %v91
    %v197 = vpop.f32.mrb[0].mxu0
    %v198 = vadd.f32 %v113, %v197
    %v199 = vpop.f32.mrb[0].mxu0
    %v200 = vpop.f32.mrb[0].mxu0
    %v201 = vadd.f32 %v113, %v200
    %v202 = vpop.f32.mrb[0].mxu0
    %203 = vdwg.mxu0
    %v204 = vpack.c.bf16 %v201, %v198
    %v205 = vld [vmem:[#allocation7] sm:$0xf]
    %v206 = vld [vmem:[#allocation7 + $0x4] sm:$0xf]
    %v207 = vld [vmem:[#allocation7 + $0x8] sm:$0xf]
    %v208 = vld [vmem:[#allocation7 + $0xc] sm:$0xf]
    %v209 = vld [vmem:[#allocation7 + $0x10] sm:$0xf]
    %v210 = vld [vmem:[#allocation7 + $0x14] sm:$0xf]
    %v211 = vld [vmem:[#allocation7 + $0x18] sm:$0xf]
    %v212 = vld [vmem:[#allocation7 + $0x1c] sm:$0xf]
    %v213 = vld [vmem:[#allocation7 + $0x20] sm:$0xf]
    %v214 = vld [vmem:[#allocation7 + $0x24] sm:$0xf]
    %v215 = vld [vmem:[#allocation7 + $0x28] sm:$0xf]
    %v216 = vld [vmem:[#allocation7 + $0x2c] sm:$0xf]
    %v217 = vld [vmem:[#allocation7 + $0x30] sm:$0xf]
    %v218 = vld [vmem:[#allocation7 + $0x34] sm:$0xf]
    %v219 = vld [vmem:[#allocation7 + $0x38] sm:$0xf]
    %v220 = vld [vmem:[#allocation7 + $0x3c] sm:$0xf]
    %v221 = vld [vmem:[%s4] sm:$0x1]
    %v223 = vlaneseq
    %v224 = vshrl.u32 %v223, 7
    %v225 = vsub.s32 0, %v224
    %v226 = vrot.slane %v221, %v225
    %v244 = vunpack.c.l.b16 %v205
    %v245 = vunpack.c.l.b16 %v206
    %v246 = vunpack.c.l.b16 %v207
    %v247 = vunpack.c.l.b16 %v208
    %v248 = vunpack.c.l.b16 %v209
    %v249 = vunpack.c.l.b16 %v210
    %v250 = vunpack.c.l.b16 %v211
    %v251 = vunpack.c.l.b16 %v212
    %v252 = vunpack.c.l.b16 %v213
    %v253 = vunpack.c.l.b16 %v214
    %v254 = vunpack.c.l.b16 %v215
    %v255 = vunpack.c.l.b16 %v216
    %v256 = vunpack.c.l.b16 %v217
    %v257 = vunpack.c.l.b16 %v218
    %v258 = vunpack.c.l.b16 %v219
    %v259 = vunpack.c.l.b16 %v220
    %v260 = vpack.c.b16 %v245, %v244
    %v261 = vpack.c.b16 %v247, %v246
    %v262 = vpack.c.b16 %v249, %v248
    %v263 = vpack.c.b16 %v251, %v250
    %v264 = vpack.c.b16 %v253, %v252
    %v265 = vpack.c.b16 %v255, %v254
    %v266 = vpack.c.b16 %v257, %v256
    %v267 = vpack.c.b16 %v259, %v258
    %276 = vmatprep.subr.bf16.mxu0 0
    %277 = vmatpush1.bf16.msra.mxu0 %v260
    %278 = vmatprep.subr.bf16.mxu0 0
    %279 = vmatpush1.bf16.msra.mxu0 %v261
    %280 = vmatprep.subr.bf16.mxu0 0
    %281 = vmatpush1.bf16.msra.mxu0 %v262
    %282 = vmatprep.subr.bf16.mxu0 0
    %283 = vmatpush1.bf16.msra.mxu0 %v263
    %284 = vmatprep.subr.bf16.mxu0 0
    %285 = vmatpush1.bf16.msra.mxu0 %v264
    %286 = vmatprep.subr.bf16.mxu0 0
    %287 = vmatpush1.bf16.msra.mxu0 %v265
    %288 = vmatprep.subr.bf16.mxu0 0
    %289 = vmatpush1.bf16.msra.mxu0 %v266
    %290 = vmatprep.subr.bf16.mxu0 0
    %291 = vmatpush1.bf16.msra.mxu0 %v267
    %292 = vmatprep.subr.bf16.mxu0 0
    %293 = vmatpush1.bf16.msra.mxu0 0
    %294 = vmatprep.subr.bf16.mxu0 0
    %295 = vmatpush1.bf16.msra.mxu0 0
    %296 = vmatprep.subr.bf16.mxu0 0
    %297 = vmatpush1.bf16.msra.mxu0 0
    %298 = vmatprep.subr.bf16.mxu0 0
    %299 = vmatpush1.bf16.msra.mxu0 0
    %300 = vmatprep.subr.bf16.mxu0 0
    %301 = vmatpush1.bf16.msra.mxu0 0
    %302 = vmatprep.subr.bf16.mxu0 0
    %303 = vmatpush1.bf16.msra.mxu0 0
    %304 = vmatprep.subr.bf16.mxu0 0
    %305 = vmatpush1.bf16.msra.mxu0 0
    %306 = vmatprep.subr.bf16.mxu0 0
    %307 = vmatpush1.bf16.msra.mxu0 0
    %308 = vmatprep.mubr.bf16.mxu0 0
    %309 = vmatmul.mubr.bf16.gmra.mrb[0].mxu0 %v204
    %v310 = vpop.f32.mrb[0].mxu0
    %v311 = vadd.f32 %v226, %v310
    %v312 = vpop.f32.mrb[0].mxu0
    %v313 = vpop.f32.mrb[0].mxu0
    %v314 = vadd.f32 %v226, %v313
    %v315 = vpop.f32.mrb[0].mxu0
    %316 = vdwg.mxu0
    %v317 = vmax.f32 %v311, 0.0
    %v318 = vmax.f32 %v314, 0.0
    %v319 = vpack.c.bf16 %v318, %v317
    %v320 = vld [vmem:[#allocation8] sm:$0xf]
    %v321 = vld [vmem:[#allocation8 + $0x4] sm:$0xf]
    %v322 = vld [vmem:[#allocation8 + $0x8] sm:$0xf]
    %v323 = vld [vmem:[#allocation8 + $0xc] sm:$0xf]
    %v324 = vld [vmem:[#allocation8 + $0x10] sm:$0xf]
    %v325 = vld [vmem:[#allocation8 + $0x14] sm:$0xf]
    %v326 = vld [vmem:[#allocation8 + $0x18] sm:$0xf]
    %v327 = vld [vmem:[#allocation8 + $0x1c] sm:$0xf]
    %v328 = vld [vmem:[#allocation8 + $0x20] sm:$0xf]
    %v329 = vld [vmem:[#allocation8 + $0x24] sm:$0xf]
    %v330 = vld [vmem:[#allocation8 + $0x28] sm:$0xf]
    %v331 = vld [vmem:[#allocation8 + $0x2c] sm:$0xf]
    %v332 = vld [vmem:[#allocation8 + $0x30] sm:$0xf]
    %v333 = vld [vmem:[#allocation8 + $0x34] sm:$0xf]
    %v334 = vld [vmem:[#allocation8 + $0x38] sm:$0xf]
    %v335 = vld [vmem:[#allocation8 + $0x3c] sm:$0xf]
    %v336 = vld [vmem:[%s6] sm:$0x1]
    %v338 = vlaneseq
    %v339 = vshrl.u32 %v338, 7
    %v340 = vsub.s32 0, %v339
    %v341 = vrot.slane %v336, %v340
    %v359 = vunpack.c.l.b16 %v320
    %v360 = vunpack.c.l.b16 %v321
    %v361 = vunpack.c.l.b16 %v322
    %v362 = vunpack.c.l.b16 %v323
    %v363 = vunpack.c.l.b16 %v324
    %v364 = vunpack.c.l.b16 %v325
    %v365 = vunpack.c.l.b16 %v326
    %v366 = vunpack.c.l.b16 %v327
    %v367 = vunpack.c.l.b16 %v328
    %v368 = vunpack.c.l.b16 %v329
    %v369 = vunpack.c.l.b16 %v330
    %v370 = vunpack.c.l.b16 %v331
    %v371 = vunpack.c.l.b16 %v332
    %v372 = vunpack.c.l.b16 %v333
    %v373 = vunpack.c.l.b16 %v334
    %v374 = vunpack.c.l.b16 %v335
    %v375 = vpack.c.b16 %v360, %v359
    %v376 = vpack.c.b16 %v362, %v361
    %v377 = vpack.c.b16 %v364, %v363
    %v378 = vpack.c.b16 %v366, %v365
    %v379 = vpack.c.b16 %v368, %v367
    %v380 = vpack.c.b16 %v370, %v369
    %v381 = vpack.c.b16 %v372, %v371
    %v382 = vpack.c.b16 %v374, %v373
    %391 = vmatprep.subr.bf16.mxu0 0
    %392 = vmatpush1.bf16.msra.mxu0 %v375
    %393 = vmatprep.subr.bf16.mxu0 0
    %394 = vmatpush1.bf16.msra.mxu0 %v376
    %395 = vmatprep.subr.bf16.mxu0 0
    %396 = vmatpush1.bf16.msra.mxu0 %v377
    %397 = vmatprep.subr.bf16.mxu0 0
    %398 = vmatpush1.bf16.msra.mxu0 %v378
    %399 = vmatprep.subr.bf16.mxu0 0
    %400 = vmatpush1.bf16.msra.mxu0 %v379
    %401 = vmatprep.subr.bf16.mxu0 0
    %402 = vmatpush1.bf16.msra.mxu0 %v380
    %403 = vmatprep.subr.bf16.mxu0 0
    %404 = vmatpush1.bf16.msra.mxu0 %v381
    %405 = vmatprep.subr.bf16.mxu0 0
    %406 = vmatpush1.bf16.msra.mxu0 %v382
    %407 = vmatprep.subr.bf16.mxu0 0
    %408 = vmatpush1.bf16.msra.mxu0 0
    %409 = vmatprep.subr.bf16.mxu0 0
    %410 = vmatpush1.bf16.msra.mxu0 0
    %411 = vmatprep.subr.bf16.mxu0 0
    %412 = vmatpush1.bf16.msra.mxu0 0
    %413 = vmatprep.subr.bf16.mxu0 0
    %414 = vmatpush1.bf16.msra.mxu0 0
    %415 = vmatprep.subr.bf16.mxu0 0
    %416 = vmatpush1.bf16.msra.mxu0 0
    %417 = vmatprep.subr.bf16.mxu0 0
    %418 = vmatpush1.bf16.msra.mxu0 0
    %419 = vmatprep.subr.bf16.mxu0 0
    %420 = vmatpush1.bf16.msra.mxu0 0
    %421 = vmatprep.subr.bf16.mxu0 0
    %422 = vmatpush1.bf16.msra.mxu0 0
    %423 = vmatprep.mubr.bf16.mxu0 0
    %424 = vmatmul.mubr.bf16.gmra.mrb[0].mxu0 %v319
    %v425 = vpop.f32.mrb[0].mxu0
    %v426 = vadd.f32 %v341, %v425
    %v427 = vpop.f32.mrb[0].mxu0
    %v428 = vpop.f32.mrb[0].mxu0
    %v429 = vadd.f32 %v341, %v428
    %v430 = vpop.f32.mrb[0].mxu0
    %431 = vdwg.mxu0
    %v432 = vadd.f32 %v426, %v198
    %v433 = vadd.f32 %v429, %v201
    %434 = vadd.xlane.f32.xlu0 %v432
    %v435 = vpop.xlane.xlu0 %434
    %436 = vadd.xlane.f32.xlu0 %v433
    %v437 = vpop.xlane.xlu0 %436
    %v438 = vrcp.pop 128.0
    %v439 = vmul.f32 %v435, %v438
    %v440 = vmul.f32 %v437, %v438
    %v441 = vsub.f32 %v432, %v439
    %v442 = vsub.f32 %v433, %v440
    %v443 = vmul.f32 %v441, %v441
    %v444 = vmul.f32 %v442, %v442
    %445 = vadd.xlane.f32.xlu0 %v443
    %v446 = vpop.xlane.xlu0 %445
    %447 = vadd.xlane.f32.xlu0 %v444
    %v448 = vpop.xlane.xlu0 %447
    %v449 = vmul.f32 %v446, %v438
    %v450 = vmul.f32 %v448, %v438
    %v451 = vadd.f32 %v449, 1e-05
    %v452 = vadd.f32 %v450, 1e-05
    %v453 = vrsqrt.pop %v451
    %v454 = vrsqrt.pop %v452
    %v455 = vmul.f32 %v441, %v453
    %v456 = vmul.f32 %v442, %v454
    %v457 = vld [vmem:[%s7] sm:$0x1]
    %v459 = vlaneseq
    %v460 = vshrl.u32 %v459, 7
    %v461 = vsub.s32 0, %v460
    %v462 = vrot.slane %v457, %v461
    %v464 = vmul.f32 %v455, %v462
    %v465 = vmul.f32 %v456, %v462
    %v466 = vld [vmem:[%s8] sm:$0x1]
    %v468 = vlaneseq
    %v469 = vshrl.u32 %v468, 7
    %v470 = vsub.s32 0, %v469
    %v471 = vrot.slane %v466, %v470
    %v473 = vadd.f32 %v464, %v471
    %v474 = vadd.f32 %v465, %v471
    %475 = vst [vmem:[#allocation10] sm:$0xff] %v473
    %476 = vst [vmem:[#allocation10 + $0x8] sm:$0xff] %v474
    // Predicated region
    $region54: #{tpu_custom_call.1} parent=1 // pred_check
      _
    $region55: #{tpu_custom_call.1} parent=1 // pred_check_branch
      %478 = sbr.rel (0) target = $region57
    $region56: #{tpu_custom_call.1} parent=1 // pred_region
      %s480 = ssub.s32 256, 256
      %481 = vsyncadd [#allocation4], %s480
      %s482 = sshll.u32 [#allocation10], 4
      %s483 = int_to_ptr.vmem [resolvable:$true] %s482
      %488 = dma.vmem_to_hbm [thread:$0]  %s483, 256, %s9, [#allocation4], 128, 128, 8
    $region57: #{tpu_custom_call.1} parent=1 // pred_fallthru
      _
    // Predicated region
    $region58: #{tpu_custom_call.1} parent=1 // pred_check
      _
    $region59: #{tpu_custom_call.1} parent=1 // pred_check_branch
      %490 = sbr.rel (0) target = $region61
    $region60: #{tpu_custom_call.1} parent=1 // pred_region
      %491 = dma.done [#allocation4], 256
    $region61: #{tpu_custom_call.1} parent=1 // pred_fallthru
      _
    %492 = vsyncpa [#allocation3], 1
    %493 = vsyncpa [#allocation6], 1
    %494 = vsyncpa [#allocation9], 1
    %495 = vsyncpa [#allocation4], 1

</llo_original>
